<compile_context>
chip_gen: v7x
topology: tpu7x:2x2x1
jax: 0.10.0
libtpu: 0.0.40
codegen_flags: <defaults>
</compile_context>

<pallas_src>
import jax
import jax.numpy as jnp
from jax.experimental import pallas as pl
from jax.experimental.pallas import tpu as pltpu


def _bio_embedding_kernel(idx_ref, table_t_ref, out_ref):
    # idx_ref:     [1, Lt]         int32     (lane tile of the flattened B*T indices)
    # table_t_ref: [C, num_bios]   out dtype (embedding table, pre-transposed)
    # out_ref:     [C, Lt]         out dtype (channels-first, lane-dense output tile)
    _, num_bios = table_t_ref.shape

    ids = idx_ref[...]                               # [1, Lt] int32, loaded once

    # Unrolled VPU select over the (static, tiny) vocabulary -- bit-exact gather.
    # Accumulate directly in the output dtype; selection performs no arithmetic
    # on table values so results match a float gather exactly.
    acc = jnp.zeros(out_ref.shape, dtype=out_ref.dtype)
    for n in range(num_bios):                        # static unroll (num_bios is tiny)
        col = table_t_ref[:, n:n + 1]                # [C, 1]
        acc = jnp.where(ids == n, col, acc)          # mask [1,Lt] / col [C,1] broadcast

    # Single lane-dense store of the whole tile.
    out_ref[...] = acc


def bio_embedding(indices, table, *, lane_tile=1024):
    """indices: int [B, T_bio]; table: [num_bios, C] (float32 or bfloat16).

    Returns [B, C, T_bio] in table.dtype  (== PyTorch emb(x).transpose(2, 1)).
    Out-of-range / negative indices produce an all-zero row (nn.Embedding raises).
    """
    B, T = indices.shape
    num_bios, C = table.shape
    L = B * T                                         # fused lane axis (B folded into T)

    idx_flat = indices.astype(jnp.int32).reshape(1, L)
    table_t = jnp.transpose(table)                    # [C, num_bios]; one-time param plumbing

    # Lane tile over the fused B*T axis: a multiple of 128 (up to `lane_tile`)
    # when L permits, otherwise a single full-extent tile (allowed by the
    # (8,128) rule since it equals the full array dim).
    if L % 128 == 0:
        lt = max(128, min(lane_tile, L) - (min(lane_tile, L) % 128))
        while L % lt != 0:                            # terminates: 128 always divides L here
            lt -= 128
    else:
        lt = L
    grid = (L // lt,)

    itemsize = jnp.dtype(table.dtype).itemsize
    cost = pl.CostEstimate(
        flops=0,
        transcendentals=0,
        bytes_accessed=L * 4 + C * num_bios * itemsize + C * L * itemsize,
    )

    out_slab = pl.pallas_call(
        _bio_embedding_kernel,
        out_shape=jax.ShapeDtypeStruct((C, L), table.dtype),
        grid=grid,
        in_specs=[
            pl.BlockSpec((1, lt), lambda i: (0, i)),            # flattened index lane tile
            pl.BlockSpec((C, num_bios), lambda i: (0, 0)),      # full (tiny) table, resident
        ],
        out_specs=pl.BlockSpec((C, lt), lambda i: (0, i)),      # lane-dense output tile
        compiler_params=pltpu.CompilerParams(
            # Tiles are independent -> shard across TensorCores (v7x megacore).
            dimension_semantics=("parallel",),
        ),
        cost_estimate=cost,
    )(idx_flat, table_t)

    # Wrapper-side layout plumbing: [C, B*T] -> [B, C, T].
    return jnp.transpose(out_slab.reshape(C, B, T), (1, 0, 2))


def bio_embedding_ref(indices, table):
    # Pure-JAX reference: emb(x).transpose(2, 1)
    return jnp.transpose(jnp.take(table, indices, axis=0), (0, 2, 1))


if __name__ == "__main__":
    # Small shapes consistent with the module's forward:
    #   x: [B, T_bio] integer segmentation labels, embedding table [num_bios, C].
    B, T_bio = 2, 8
    num_bios, out_channels = 4, 32

    key = jax.random.PRNGKey(0)
    k_idx, k_emb = jax.random.split(key)

    # Deterministic synthetic parameters (nn.Embedding weight ~ N(0, 1)).
    emb_weight = jax.random.normal(k_emb, (num_bios, out_channels), dtype=jnp.float32)
    # Deterministic input indices in [0, num_bios).
    x = jax.random.randint(k_idx, (B, T_bio), 0, num_bios, dtype=jnp.int32)

    out = bio_embedding(x, emb_weight)
    out = jax.block_until_ready(out)

    ref = bio_embedding_ref(x, emb_weight)
    assert out.shape == (B, out_channels, T_bio), out.shape
    assert jnp.allclose(out, ref, atol=1e-6), "mismatch vs reference"

    print("KERNEL_OK")
</pallas_src>

<mosaic_0001>
module attributes {stable_mosaic.version = 11 : i64} {
  func.func @_bio_embedding_kernel(%arg0: i32, %arg1: memref<1x16xi32, #tpu.memory_space<vmem>>, %arg2: memref<32x4xf32, #tpu.memory_space<vmem>>, %arg3: memref<32x16xf32, #tpu.memory_space<vmem>>) attributes {dimension_semantics = [#tpu.dimension_semantics<parallel>], iteration_bounds = array<i64: 1>, scalar_prefetch = 0 : i64, scratch_operands = 0 : i64, tpu.core_type = #tpu.core_type<tc>, window_params = [{transform_indices = @transform_0, window_bounds = array<i64: 1, 16>}, {pipeline_mode = #tpu.pipeline_mode<synchronous>, transform_indices = @transform_1, window_bounds = array<i64: 32, 4>}, {transform_indices = @transform_2, window_bounds = array<i64: 32, 16>}]} {
    %c0 = arith.constant 0 : index
    %c0_0 = arith.constant 0 : index
    %0 = vector.load %arg1[%c0, %c0_0] : memref<1x16xi32, #tpu.memory_space<vmem>>, vector<1x16xi32>
    %cst = arith.constant 0.000000e+00 : f32
    %1 = vector.broadcast %cst : f32 to vector<32x16xf32>
    %c0_1 = arith.constant 0 : index
    %c0_2 = arith.constant 0 : index
    %2 = vector.load %arg2[%c0_1, %c0_2] : memref<32x4xf32, #tpu.memory_space<vmem>>, vector<32x1xf32>
    %c0_i32 = arith.constant 0 : i32
    %3 = vector.broadcast %c0_i32 : i32 to vector<1x16xi32>
    %4 = arith.cmpi eq, %0, %3 : vector<1x16xi32>
    %5 = vector.shape_cast %4 : vector<1x16xi1> to vector<1x16xi1>
    %6 = vector.broadcast %5 : vector<1x16xi1> to vector<32x16xi1>
    %7 = vector.shape_cast %2 : vector<32x1xf32> to vector<32x1xf32>
    %8 = vector.broadcast %7 : vector<32x1xf32> to vector<32x16xf32>
    %9 = arith.select %6, %8, %1 : vector<32x16xi1>, vector<32x16xf32>
    %c0_3 = arith.constant 0 : index
    %c1 = arith.constant 1 : index
    %10 = vector.load %arg2[%c0_3, %c1] : memref<32x4xf32, #tpu.memory_space<vmem>>, vector<32x1xf32>
    %c1_i32 = arith.constant 1 : i32
    %11 = vector.broadcast %c1_i32 : i32 to vector<1x16xi32>
    %12 = arith.cmpi eq, %0, %11 : vector<1x16xi32>
    %13 = vector.shape_cast %12 : vector<1x16xi1> to vector<1x16xi1>
    %14 = vector.broadcast %13 : vector<1x16xi1> to vector<32x16xi1>
    %15 = vector.shape_cast %10 : vector<32x1xf32> to vector<32x1xf32>
    %16 = vector.broadcast %15 : vector<32x1xf32> to vector<32x16xf32>
    %17 = arith.select %14, %16, %9 : vector<32x16xi1>, vector<32x16xf32>
    %c0_4 = arith.constant 0 : index
    %c2 = arith.constant 2 : index
    %18 = vector.load %arg2[%c0_4, %c2] : memref<32x4xf32, #tpu.memory_space<vmem>>, vector<32x1xf32>
    %c2_i32 = arith.constant 2 : i32
    %19 = vector.broadcast %c2_i32 : i32 to vector<1x16xi32>
    %20 = arith.cmpi eq, %0, %19 : vector<1x16xi32>
    %21 = vector.shape_cast %20 : vector<1x16xi1> to vector<1x16xi1>
    %22 = vector.broadcast %21 : vector<1x16xi1> to vector<32x16xi1>
    %23 = vector.shape_cast %18 : vector<32x1xf32> to vector<32x1xf32>
    %24 = vector.broadcast %23 : vector<32x1xf32> to vector<32x16xf32>
    %25 = arith.select %22, %24, %17 : vector<32x16xi1>, vector<32x16xf32>
    %c0_5 = arith.constant 0 : index
    %c3 = arith.constant 3 : index
    %26 = vector.load %arg2[%c0_5, %c3] : memref<32x4xf32, #tpu.memory_space<vmem>>, vector<32x1xf32>
    %c3_i32 = arith.constant 3 : i32
    %27 = vector.broadcast %c3_i32 : i32 to vector<1x16xi32>
    %28 = arith.cmpi eq, %0, %27 : vector<1x16xi32>
    %29 = vector.shape_cast %28 : vector<1x16xi1> to vector<1x16xi1>
    %30 = vector.broadcast %29 : vector<1x16xi1> to vector<32x16xi1>
    %31 = vector.shape_cast %26 : vector<32x1xf32> to vector<32x1xf32>
    %32 = vector.broadcast %31 : vector<32x1xf32> to vector<32x16xf32>
    %33 = arith.select %30, %32, %25 : vector<32x16xi1>, vector<32x16xf32>
    %c0_6 = arith.constant 0 : index
    %c0_7 = arith.constant 0 : index
    %34 = vector.load %arg3[%c0_6, %c0_7] : memref<32x16xf32, #tpu.memory_space<vmem>>, vector<32x16xf32>
    tpu.vector_store %arg3[%c0_6, %c0_7], %33 {strides = array<i32>} : memref<32x16xf32, #tpu.memory_space<vmem>>, vector<32x16xf32>,
    return
  }
  func.func @transform_0(%arg0: i32) -> (i32, i32) {
    %c0_i32 = arith.constant 0 : i32
    %c0_i32_0 = arith.constant 0 : i32
    return %c0_i32, %arg0 : i32, i32
  }
  func.func @transform_1(%arg0: i32) -> (i32, i32) {
    %c0_i32 = arith.constant 0 : i32
    %c0_i32_0 = arith.constant 0 : i32
    %c0_i32_1 = arith.constant 0 : i32
    return %c0_i32, %c0_i32_0 : i32, i32
  }
  func.func @transform_2(%arg0: i32) -> (i32, i32) {
    %c0_i32 = arith.constant 0 : i32
    %c0_i32_0 = arith.constant 0 : i32
    return %c0_i32, %arg0 : i32, i32
  }
}

</mosaic_0001>

<llo_original>
// kernel: tpu_custom_call.1
$region0: #{tpu_custom_call.1}
  #allocation0 [shape = 'u32[]', space=smem, size = 0x4, offset = 0x4, fixed_abs, tag = 'smem constant byte address 0x4 - core index']
  #allocation1 [shape = 'u32[144,128]{1,0:T(1,128)}', space=vmem, size = 0x12000, scoped, tag = 'internal scratch']
  %s0 = inlined_call_operand.vmem [shape: s32[1,16], index: 0, kind: input, shape index: {}]
  %s1 = inlined_call_operand.vmem [shape: f32[32,4], index: 1, kind: input, shape index: {}]
  %s2 = inlined_call_operand.vmem [shape: f32[32,16], index: 2, kind: output, shape index: {}]
  %s3 = sld [smem:[#allocation0]]
  $region18: #{tpu_custom_call.1} parent=0
    _
  %s5 = ssub.s32 1, %s3
  %s6 = scalar_select 0, %s5, %s3
  // Predicated region
  $region2: #{tpu_custom_call.1} parent=0 // pred_check
    _
  $region3: #{tpu_custom_call.1} parent=0 // pred_check_branch
    %8 = sbr.rel (0) target = $region5
  $region4: #{tpu_custom_call.1} parent=0 // pred_region
    _
  $region5: #{tpu_custom_call.1} parent=0 // pred_fallthru
    _
  // Predicated region
  $region6: #{tpu_custom_call.1} parent=0 // pred_check
    _
  $region7: #{tpu_custom_call.1} parent=0 // pred_check_branch
    %10 = sbr.rel (0) target = $region9
  $region8: #{tpu_custom_call.1} parent=0 // pred_region
    _
  $region9: #{tpu_custom_call.1} parent=0 // pred_fallthru
    _
  %v11 = vld [vmem:[%s0] sm:$0x1]
  %v12 = vld [vmem:[%s1] sm:$0xff]
  %v13 = vld [vmem:[%s1 + $0x8] sm:$0xff]
  %v14 = vld [vmem:[%s1 + $0x10] sm:$0xff]
  %v15 = vld [vmem:[%s1 + $0x18] sm:$0xff]
  %vm16 = vcmp.eq.s32.totalorder %v11, 0
  %v17 = vsel %vm16, 1, 0
  %v18 = vlaneseq
  %v19 = vshrl.u32 %v18, 7
  %v20 = vsub.s32 0, %v19
  %v21 = vrot.slane %v17, %v20
  %vm22 = vcmp.eq.s32.totalorder %v21, 1
  %24 = vset.pattern.permute.xlu0 0
  %25 = vperm.xlu0 %24, %v12
  %v26 = vpop.permute.xlu0 %25
  %29 = vset.pattern.permute.xlu0 0
  %30 = vperm.xlu0 %29, %v13
  %v31 = vpop.permute.xlu0 %30
  %34 = vset.pattern.permute.xlu0 0
  %35 = vperm.xlu0 %34, %v14
  %v36 = vpop.permute.xlu0 %35
  %39 = vset.pattern.permute.xlu0 0
  %40 = vperm.xlu0 %39, %v15
  %v41 = vpop.permute.xlu0 %40
  %v43 = vsel %vm22, %v26, 0.0
  %v44 = vsel %vm22, %v31, 0.0
  %v45 = vsel %vm22, %v36, 0.0
  %v46 = vsel %vm22, %v41, 0.0
  %vm47 = vcmp.eq.s32.totalorder %v11, 1
  %v48 = vsel %vm47, 1, 0
  %v49 = vlaneseq
  %v50 = vshrl.u32 %v49, 7
  %v51 = vsub.s32 0, %v50
  %v52 = vrot.slane %v48, %v51
  %vm53 = vcmp.eq.s32.totalorder %v52, 1
  %54 = vset.pattern.permute.xlu0 1
  %55 = vperm.xlu0 %54, %v12
  %v56 = vpop.permute.xlu0 %55
  %58 = vset.pattern.permute.xlu0 1
  %59 = vperm.xlu0 %58, %v13
  %v60 = vpop.permute.xlu0 %59
  %62 = vset.pattern.permute.xlu0 1
  %63 = vperm.xlu0 %62, %v14
  %v64 = vpop.permute.xlu0 %63
  %66 = vset.pattern.permute.xlu0 1
  %67 = vperm.xlu0 %66, %v15
  %v68 = vpop.permute.xlu0 %67
  %v70 = vsel %vm53, %v56, %v43
  %v71 = vsel %vm53, %v60, %v44
  %v72 = vsel %vm53, %v64, %v45
  %v73 = vsel %vm53, %v68, %v46
  %vm74 = vcmp.eq.s32.totalorder %v11, 2
  %v75 = vsel %vm74, 1, 0
  %v76 = vlaneseq
  %v77 = vshrl.u32 %v76, 7
  %v78 = vsub.s32 0, %v77
  %v79 = vrot.slane %v75, %v78
  %vm80 = vcmp.eq.s32.totalorder %v79, 1
  %81 = vset.pattern.permute.xlu0 2
  %82 = vperm.xlu0 %81, %v12
  %v83 = vpop.permute.xlu0 %82
  %85 = vset.pattern.permute.xlu0 2
  %86 = vperm.xlu0 %85, %v13
  %v87 = vpop.permute.xlu0 %86
  %89 = vset.pattern.permute.xlu0 2
  %90 = vperm.xlu0 %89, %v14
  %v91 = vpop.permute.xlu0 %90
  %93 = vset.pattern.permute.xlu0 2
  %94 = vperm.xlu0 %93, %v15
  %v95 = vpop.permute.xlu0 %94
  %v97 = vsel %vm80, %v83, %v70
  %v98 = vsel %vm80, %v87, %v71
  %v99 = vsel %vm80, %v91, %v72
  %v100 = vsel %vm80, %v95, %v73
  %vm101 = vcmp.eq.s32.totalorder %v11, 3
  %v102 = vsel %vm101, 1, 0
  %v103 = vlaneseq
  %v104 = vshrl.u32 %v103, 7
  %v105 = vsub.s32 0, %v104
  %v106 = vrot.slane %v102, %v105
  %vm107 = vcmp.eq.s32.totalorder %v106, 1
  %108 = vset.pattern.permute.xlu0 3
  %109 = vperm.xlu0 %108, %v12
  %v110 = vpop.permute.xlu0 %109
  %112 = vset.pattern.permute.xlu0 3
  %113 = vperm.xlu0 %112, %v13
  %v114 = vpop.permute.xlu0 %113
  %116 = vset.pattern.permute.xlu0 3
  %117 = vperm.xlu0 %116, %v14
  %v118 = vpop.permute.xlu0 %117
  %120 = vset.pattern.permute.xlu0 3
  %121 = vperm.xlu0 %120, %v15
  %v122 = vpop.permute.xlu0 %121
  %v124 = vsel %vm107, %v110, %v97
  %v125 = vsel %vm107, %v114, %v98
  %v126 = vsel %vm107, %v118, %v99
  %v127 = vsel %vm107, %v122, %v100
  %vm128 = vcmask 130048
  %129 = vst.msk [vmem:[%s2] sm:$0xff] %vm128, %v124
  %130 = vst.msk [vmem:[%s2 + $0x8] sm:$0xff] %vm128, %v125
  %131 = vst.msk [vmem:[%s2 + $0x10] sm:$0xff] %vm128, %v126
  %132 = vst.msk [vmem:[%s2 + $0x18] sm:$0xff] %vm128, %v127
  // Predicated region
  $region10: #{tpu_custom_call.1} parent=0 // pred_check
    _
  $region11: #{tpu_custom_call.1} parent=0 // pred_check_branch
    %134 = sbr.rel (0) target = $region13
  $region12: #{tpu_custom_call.1} parent=0 // pred_region
    _
  $region13: #{tpu_custom_call.1} parent=0 // pred_fallthru
    _
  // Predicated region
  $region14: #{tpu_custom_call.1} parent=0 // pred_check
    _
  $region15: #{tpu_custom_call.1} parent=0 // pred_check_branch
    %136 = sbr.rel (0) target = $region17
  $region16: #{tpu_custom_call.1} parent=0 // pred_region
    _
  $region17: #{tpu_custom_call.1} parent=0 // pred_fallthru
    _

</llo_original>
